<compile_context>
chip_gen: v7x
topology: tpu7x:2x2x1
jax: 0.10.0
libtpu: 0.0.40
codegen_flags: <defaults>
</compile_context>

<pallas_src>
import functools
import math

import jax
import jax.numpy as jnp
from jax.experimental import pallas as pl
from jax.experimental.pallas import tpu as pltpu

LANE = 128
SUBLANE = 8


def _round_up(x: int, m: int) -> int:
    return (x + m - 1) // m * m


def _mlp_policy_kernel(src_ref, w_ref, b_ref, out_ref, *, dp):
    """src_ref: [TB, Dp] bf16; w_ref: [Dp+128, 128] bf16; b_ref: [2, 128] f32; out: [TB, 128] f32."""
    src = src_ref[...]

    # Layer 1 (fused: hidden lanes | +temp lane | -temp lane).  f32 MXU accumulation.
    h = jnp.dot(src, w_ref[:dp, :], preferred_element_type=jnp.float32)
    # f32 bias add + plain ReLU on every lane (no iota / select).
    h = jnp.maximum(h + b_ref[0:1, :], 0.0)

    # Layer 2 (fused: action lanes | temp pass-through = ReLU(t) - ReLU(-t)).
    out = jnp.dot(h.astype(w_ref.dtype), w_ref[dp:, :],
                  preferred_element_type=jnp.float32)
    out_ref[...] = (out + b_ref[1:2, :]).astype(out_ref.dtype)


def build_fused_params(w1, b1, w2, b2, wt, bt, *, weight_dtype=jnp.bfloat16):
    """Precompute the fused weight/bias slabs ONCE (not per forward call).

    w1: [D, H]; b1: [1, H]; w2: [H, A]; b2: [1, A]; wt: [D, 1]; bt: [1, 1].
    Returns (wstack [Dp+128, 128] weight_dtype, bstack [2, 128] f32).
    """
    D, H = w1.shape
    A = w2.shape[1]
    assert H + 2 <= LANE, "fused layout needs lanes H and H+1 for the +/- temp trick"
    assert A + 1 <= LANE, "fused layout needs lane A for the temp pass-through"

    Dp = _round_up(D, LANE)

    wstack = jnp.zeros((Dp + LANE, LANE), jnp.float32)
    # Layer-1 block (rows [0, Dp)): [ w1 | wt | -wt | 0 ].
    wstack = wstack.at[:D, :H].set(w1.astype(jnp.float32))
    wstack = wstack.at[:D, H].set(wt.reshape(D).astype(jnp.float32))
    wstack = wstack.at[:D, H + 1].set(-wt.reshape(D).astype(jnp.float32))
    # Layer-2 block (rows [Dp, Dp+128)): w2 top-left, +/-1 pass-through into lane A.
    wstack = wstack.at[Dp:Dp + H, :A].set(w2.astype(jnp.float32))
    wstack = wstack.at[Dp + H, A].set(1.0)
    wstack = wstack.at[Dp + H + 1, A].set(-1.0)
    wstack = wstack.astype(weight_dtype)   # bf16 weights: exact for the +/-1 entries

    bstack = jnp.zeros((2, LANE), jnp.float32)
    bstack = bstack.at[0, :H].set(b1.reshape(H).astype(jnp.float32))
    bstack = bstack.at[0, H].set(bt.reshape(()).astype(jnp.float32))
    bstack = bstack.at[0, H + 1].set(-bt.reshape(()).astype(jnp.float32))
    bstack = bstack.at[1, :A].set(b2.reshape(A).astype(jnp.float32))

    return wstack, bstack


def mlp_policy(src, wstack, bstack, act_dim, *, tb_max=512):
    """Forward pass. src: [B, D] f32; wstack/bstack from build_fused_params.

    tb_max: batch tile size (rows).  512 is a good default for v6e/v7x; ~256 on v5e
    (smaller scoped VMEM / HBM bandwidth).  Weights use a constant index_map so they
    are fetched once and stay VMEM-resident across the batch grid.
    """
    B, D = src.shape
    Dp = wstack.shape[0] - LANE

    TB = min(tb_max, _round_up(B, SUBLANE))
    Bp = _round_up(B, TB)

    # Pad batch/feature dims (zero rows/cols are inert) and cast once to the MXU dtype.
    src_p = jnp.pad(src, ((0, Bp - B), (0, Dp - D))).astype(wstack.dtype)

    slab = pl.pallas_call(
        functools.partial(_mlp_policy_kernel, dp=Dp),
        out_shape=jax.ShapeDtypeStruct((Bp, LANE), jnp.float32),
        grid_spec=pltpu.PrefetchScalarGridSpec(
            num_scalar_prefetch=0,
            grid=(Bp // TB,),
            in_specs=[
                pl.BlockSpec((TB, Dp), lambda i: (i, 0)),              # src tile
                pl.BlockSpec((Dp + LANE, LANE), lambda i: (0, 0)),     # fused weights
                pl.BlockSpec((2, LANE), lambda i: (0, 0)),             # fused biases
            ],
            out_specs=pl.BlockSpec((TB, LANE), lambda i: (i, 0)),
        ),
        compiler_params=pltpu.CompilerParams(
            dimension_semantics=("parallel",)),
    )(src_p, wstack, bstack)

    # Wrapper-side slicing of the lane-dense slab (free layout plumbing).
    actions = slab[:B, :act_dim]
    temp_distance = slab[:B, act_dim:act_dim + 1]
    return actions, temp_distance


def _torch_linear_init(key, fan_in, fan_out, dtype=jnp.float32):
    # Matches nn.Linear default init: U(-1/sqrt(fan_in), 1/sqrt(fan_in)).
    kw, kb = jax.random.split(key)
    bound = 1.0 / math.sqrt(fan_in)
    w = jax.random.uniform(kw, (fan_in, fan_out), dtype, -bound, bound)
    b = jax.random.uniform(kb, (1, fan_out), dtype, -bound, bound)
    return w, b


if __name__ == "__main__":
    # Small synthetic config consistent with the module:
    #   obs_context_size=32, obs_len=3  ->  in_dim = 32 * (3 + 1) = 128
    obs_context_size = 32
    obs_len = 3
    in_dim = obs_context_size * (obs_len + 1)   # 128
    hidden = 64                                  # controller[0].out_features
    act_dim = 2                                  # controller output (actions)
    batch = 8

    key = jax.random.PRNGKey(0)
    k_src, k1, k2, kt = jax.random.split(key, 4)

    src = jax.random.normal(k_src, (batch, in_dim), jnp.float32)
    w1, b1 = _torch_linear_init(k1, in_dim, hidden)     # controller[0]
    w2, b2 = _torch_linear_init(k2, hidden, act_dim)    # controller[2]
    wt, bt = _torch_linear_init(kt, in_dim, 1)          # temp_predictor

    # Fused slabs are built ONCE (init-time), not inside the per-call forward.
    wstack, bstack = build_fused_params(w1, b1, w2, b2, wt, bt)
    wstack, bstack = jax.block_until_ready((wstack, bstack))

    forward = jax.jit(mlp_policy, static_argnums=(3,))
    actions, temp_distance = forward(src, wstack, bstack, act_dim)
    jax.block_until_ready((actions, temp_distance))

    # Pure-JAX f32 reference.  Kernel uses bf16 MXU inputs with f32 accumulation, so
    # compare with bf16-appropriate tolerances.
    h_ref = jnp.maximum(src @ w1 + b1, 0.0)
    actions_ref = h_ref @ w2 + b2
    temp_ref = src @ wt + bt

    assert actions.shape == (batch, act_dim)
    assert temp_distance.shape == (batch, 1)
    assert jnp.allclose(actions, actions_ref, atol=5e-2, rtol=5e-2)
    assert jnp.allclose(temp_distance, temp_ref, atol=5e-2, rtol=5e-2)

    print("KERNEL_OK")
</pallas_src>

<mosaic_0001>
module attributes {stable_mosaic.version = 11 : i64} {
  func.func @_mlp_policy_kernel(%arg0: i32, %arg1: memref<8x128xbf16, #tpu.memory_space<vmem>>, %arg2: memref<256x128xbf16, #tpu.memory_space<vmem>>, %arg3: memref<2x128xf32, #tpu.memory_space<vmem>>, %arg4: memref<8x128xf32, #tpu.memory_space<vmem>>) attributes {dimension_semantics = [#tpu.dimension_semantics<parallel>], iteration_bounds = array<i64: 1>, scalar_prefetch = 0 : i64, scratch_operands = 0 : i64, tpu.core_type = #tpu.core_type<tc>, window_params = [{transform_indices = @transform_0, window_bounds = array<i64: 8, 128>}, {pipeline_mode = #tpu.pipeline_mode<synchronous>, transform_indices = @transform_1, window_bounds = array<i64: 256, 128>}, {pipeline_mode = #tpu.pipeline_mode<synchronous>, transform_indices = @transform_2, window_bounds = array<i64: 2, 128>}, {transform_indices = @transform_3, window_bounds = array<i64: 8, 128>}]} {
    %c0 = arith.constant 0 : index
    %c0_0 = arith.constant 0 : index
    %0 = vector.load %arg1[%c0, %c0_0] : memref<8x128xbf16, #tpu.memory_space<vmem>>, vector<8x128xbf16>
    %c0_1 = arith.constant 0 : index
    %c0_2 = arith.constant 0 : index
    %1 = vector.load %arg2[%c0_1, %c0_2] : memref<256x128xbf16, #tpu.memory_space<vmem>>, vector<128x128xbf16>
    %cst = arith.constant dense<0.000000e+00> : vector<8x128xf32>
    %2 = tpu.matmul %0, %1, %cst {dimension_numbers = #tpu.dot_dimension_numbers<[1], [0], [0], [1], [0, 0, 1, 1], [], []>} : vector<8x128xbf16>, vector<128x128xbf16>, vector<8x128xf32> -> vector<8x128xf32>
    %c0_3 = arith.constant 0 : index
    %c0_4 = arith.constant 0 : index
    %3 = vector.load %arg3[%c0_3, %c0_4] : memref<2x128xf32, #tpu.memory_space<vmem>>, vector<1x128xf32>
    %4 = vector.broadcast %3 : vector<1x128xf32> to vector<8x128xf32>
    %5 = arith.addf %2, %4 : vector<8x128xf32>
    %cst_5 = arith.constant 0.000000e+00 : f32
    %6 = vector.broadcast %cst_5 : f32 to vector<8x128xf32>
    %7 = arith.maximumf %5, %6 : vector<8x128xf32>
    %8 = arith.truncf %7 : vector<8x128xf32> to vector<8x128xbf16>
    %c128 = arith.constant 128 : index
    %c0_6 = arith.constant 0 : index
    %9 = vector.load %arg2[%c128, %c0_6] : memref<256x128xbf16, #tpu.memory_space<vmem>>, vector<128x128xbf16>
    %cst_7 = arith.constant dense<0.000000e+00> : vector<8x128xf32>
    %10 = tpu.matmul %8, %9, %cst_7 {dimension_numbers = #tpu.dot_dimension_numbers<[1], [0], [0], [1], [0, 0, 1, 1], [], []>} : vector<8x128xbf16>, vector<128x128xbf16>, vector<8x128xf32> -> vector<8x128xf32>
    %c1 = arith.constant 1 : index
    %c0_8 = arith.constant 0 : index
    %11 = vector.load %arg3[%c1, %c0_8] : memref<2x128xf32, #tpu.memory_space<vmem>>, vector<1x128xf32>
    %12 = vector.broadcast %11 : vector<1x128xf32> to vector<8x128xf32>
    %13 = arith.addf %10, %12 : vector<8x128xf32>
    %c0_9 = arith.constant 0 : index
    %c0_10 = arith.constant 0 : index
    %14 = vector.load %arg4[%c0_9, %c0_10] : memref<8x128xf32, #tpu.memory_space<vmem>>, vector<8x128xf32>
    tpu.vector_store %arg4[%c0_9, %c0_10], %13 {strides = array<i32>} : memref<8x128xf32, #tpu.memory_space<vmem>>, vector<8x128xf32>,
    return
  }
  func.func @transform_0(%arg0: i32) -> (i32, i32) {
    %c0_i32 = arith.constant 0 : i32
    %c0_i32_0 = arith.constant 0 : i32
    return %arg0, %c0_i32 : i32, i32
  }
  func.func @transform_1(%arg0: i32) -> (i32, i32) {
    %c0_i32 = arith.constant 0 : i32
    %c0_i32_0 = arith.constant 0 : i32
    %c0_i32_1 = arith.constant 0 : i32
    return %c0_i32, %c0_i32_0 : i32, i32
  }
  func.func @transform_2(%arg0: i32) -> (i32, i32) {
    %c0_i32 = arith.constant 0 : i32
    %c0_i32_0 = arith.constant 0 : i32
    %c0_i32_1 = arith.constant 0 : i32
    return %c0_i32, %c0_i32_0 : i32, i32
  }
  func.func @transform_3(%arg0: i32) -> (i32, i32) {
    %c0_i32 = arith.constant 0 : i32
    %c0_i32_0 = arith.constant 0 : i32
    return %arg0, %c0_i32 : i32, i32
  }
}

</mosaic_0001>

<llo_original>
// kernel: mlp_policy.1
$region0: #{mlp_policy.1}
  #allocation0 [shape = 'u32[]', space=smem, size = 0x4, offset = 0x4, fixed_abs, tag = 'smem constant byte address 0x4 - core index']
  #allocation1 [shape = 'u32[144,128]{1,0:T(1,128)}', space=vmem, size = 0x12000, scoped, tag = 'internal scratch']
  %s0 = inlined_call_operand.vmem [shape: bf16[8,128], index: 0, kind: input, shape index: {}]
  %s1 = inlined_call_operand.hbm [shape: bf16[256,128], index: 1, kind: input, shape index: {}]
  %s2 = inlined_call_operand.vmem [shape: f32[2,128], index: 2, kind: input, shape index: {}]
  %s3 = inlined_call_operand.vmem [shape: f32[8,128], index: 3, kind: output, shape index: {}]
  %s4 = sld [smem:[#allocation0]]
  $region26: #{mlp_policy.1} parent=0
    _
  %s6 = ssub.s32 1, %s4
  %s7 = scalar_select 0, %s6, %s4
  $region1: #{mlp_policy.1} parent=0
    #allocation2 [shape = 'u8[65536]{0}', space=vmem, size = 0x10000, scoped, tag = 'input window, operand 1, single buffered']
    #allocation3 [shape = 's32[1]{0}', space=sflag, size = 0x4, scoped, tag = 'scoped memory for mlp_policy.1']
    %8 = vsyncpa [#allocation3], 0
    // Predicated region
    $region2: #{mlp_policy.1} parent=1 // pred_check
      _
    $region3: #{mlp_policy.1} parent=1 // pred_check_branch
      %10 = sbr.rel (0) target = $region5
    $region4: #{mlp_policy.1} parent=1 // pred_region
      _
    $region5: #{mlp_policy.1} parent=1 // pred_fallthru
      _
    // Predicated region
    $region6: #{mlp_policy.1} parent=1 // pred_check
      _
    $region7: #{mlp_policy.1} parent=1 // pred_check_branch
      %12 = sbr.rel (0) target = $region9
    $region8: #{mlp_policy.1} parent=1 // pred_region
      %s14 = ssub.s32 2048, 2048
      %15 = vsyncadd [#allocation3], %s14
      %s16 = sshll.u32 [#allocation2], 4
      %s17 = int_to_ptr.vmem [resolvable:$true] %s16
      %22 = dma.hbm_to_vmem [thread:$0]  %s1, 2048, %s17, [#allocation3], 64, 64, 4
    $region9: #{mlp_policy.1} parent=1 // pred_fallthru
      _
    // Predicated region
    $region10: #{mlp_policy.1} parent=1 // pred_check
      _
    $region11: #{mlp_policy.1} parent=1 // pred_check_branch
      %24 = sbr.rel (0) target = $region13
    $region12: #{mlp_policy.1} parent=1 // pred_region
      _
    $region13: #{mlp_policy.1} parent=1 // pred_fallthru
      _
    // Predicated region
    $region14: #{mlp_policy.1} parent=1 // pred_check
      _
    $region15: #{mlp_policy.1} parent=1 // pred_check_branch
      %26 = sbr.rel (0) target = $region17
    $region16: #{mlp_policy.1} parent=1 // pred_region
      %27 = dma.done [#allocation3], 2048
    $region17: #{mlp_policy.1} parent=1 // pred_fallthru
      _
    %v29 = vld [vmem:[%s0] sm:$0xf]
    %v30 = vld [vmem:[#allocation2] sm:$0xf]
    %v31 = vld [vmem:[#allocation2 + $0x4] sm:$0xf]
    %v32 = vld [vmem:[#allocation2 + $0x8] sm:$0xf]
    %v33 = vld [vmem:[#allocation2 + $0xc] sm:$0xf]
    %v34 = vld [vmem:[#allocation2 + $0x10] sm:$0xf]
    %v35 = vld [vmem:[#allocation2 + $0x14] sm:$0xf]
    %v36 = vld [vmem:[#allocation2 + $0x18] sm:$0xf]
    %v37 = vld [vmem:[#allocation2 + $0x1c] sm:$0xf]
    %v38 = vld [vmem:[#allocation2 + $0x20] sm:$0xf]
    %v39 = vld [vmem:[#allocation2 + $0x24] sm:$0xf]
    %v40 = vld [vmem:[#allocation2 + $0x28] sm:$0xf]
    %v41 = vld [vmem:[#allocation2 + $0x2c] sm:$0xf]
    %v42 = vld [vmem:[#allocation2 + $0x30] sm:$0xf]
    %v43 = vld [vmem:[#allocation2 + $0x34] sm:$0xf]
    %v44 = vld [vmem:[#allocation2 + $0x38] sm:$0xf]
    %v45 = vld [vmem:[#allocation2 + $0x3c] sm:$0xf]
    %v46 = vld [vmem:[%s2] sm:$0x1]
    %v47 = vlaneseq
    %v48 = vshrl.u32 %v47, 7
    %v49 = vsub.s32 0, %v48
    %v50 = vrot.slane %v46, %v49
    %v67 = vunpack.c.l.b16 %v30
    %v68 = vunpack.c.l.b16 %v31
    %v69 = vunpack.c.l.b16 %v32
    %v70 = vunpack.c.l.b16 %v33
    %v71 = vunpack.c.l.b16 %v34
    %v72 = vunpack.c.l.b16 %v35
    %v73 = vunpack.c.l.b16 %v36
    %v74 = vunpack.c.l.b16 %v37
    %v75 = vunpack.c.l.b16 %v38
    %v76 = vunpack.c.l.b16 %v39
    %v77 = vunpack.c.l.b16 %v40
    %v78 = vunpack.c.l.b16 %v41
    %v79 = vunpack.c.l.b16 %v42
    %v80 = vunpack.c.l.b16 %v43
    %v81 = vunpack.c.l.b16 %v44
    %v82 = vunpack.c.l.b16 %v45
    %v83 = vpack.c.b16 %v68, %v67
    %v84 = vpack.c.b16 %v70, %v69
    %v85 = vpack.c.b16 %v72, %v71
    %v86 = vpack.c.b16 %v74, %v73
    %v87 = vpack.c.b16 %v76, %v75
    %v88 = vpack.c.b16 %v78, %v77
    %v89 = vpack.c.b16 %v80, %v79
    %v90 = vpack.c.b16 %v82, %v81
    %99 = vmatprep.subr.bf16.mxu0 0
    %100 = vmatpush1.bf16.msra.mxu0 %v83
    %101 = vmatprep.subr.bf16.mxu0 0
    %102 = vmatpush1.bf16.msra.mxu0 %v84
    %103 = vmatprep.subr.bf16.mxu0 0
    %104 = vmatpush1.bf16.msra.mxu0 %v85
    %105 = vmatprep.subr.bf16.mxu0 0
    %106 = vmatpush1.bf16.msra.mxu0 %v86
    %107 = vmatprep.subr.bf16.mxu0 0
    %108 = vmatpush1.bf16.msra.mxu0 %v87
    %109 = vmatprep.subr.bf16.mxu0 0
    %110 = vmatpush1.bf16.msra.mxu0 %v88
    %111 = vmatprep.subr.bf16.mxu0 0
    %112 = vmatpush1.bf16.msra.mxu0 %v89
    %113 = vmatprep.subr.bf16.mxu0 0
    %114 = vmatpush1.bf16.msra.mxu0 %v90
    %115 = vmatprep.subr.bf16.mxu0 0
    %116 = vmatpush1.bf16.msra.mxu0 0
    %117 = vmatprep.subr.bf16.mxu0 0
    %118 = vmatpush1.bf16.msra.mxu0 0
    %119 = vmatprep.subr.bf16.mxu0 0
    %120 = vmatpush1.bf16.msra.mxu0 0
    %121 = vmatprep.subr.bf16.mxu0 0
    %122 = vmatpush1.bf16.msra.mxu0 0
    %123 = vmatprep.subr.bf16.mxu0 0
    %124 = vmatpush1.bf16.msra.mxu0 0
    %125 = vmatprep.subr.bf16.mxu0 0
    %126 = vmatpush1.bf16.msra.mxu0 0
    %127 = vmatprep.subr.bf16.mxu0 0
    %128 = vmatpush1.bf16.msra.mxu0 0
    %129 = vmatprep.subr.bf16.mxu0 0
    %130 = vmatpush1.bf16.msra.mxu0 0
    %131 = vmatprep.mubr.bf16.mxu0 0
    %132 = vmatmul.mubr.bf16.gmra.mrb[0].mxu0 %v29
    %v133 = vpop.f32.mrb[0].mxu0
    %v134 = vadd.f32 %v50, %v133
    %v135 = vpop.f32.mrb[0].mxu0
    %v136 = vpop.f32.mrb[0].mxu0
    %v137 = vpop.f32.mrb[0].mxu0
    %138 = vdwg.mxu0
    %v139 = vmax.f32 %v134, 0.0
    %v140 = vpack.c.bf16 %v139, %v139
    %v141 = vld [vmem:[#allocation2 + $0x40] sm:$0xf]
    %v142 = vld [vmem:[#allocation2 + $0x44] sm:$0xf]
    %v143 = vld [vmem:[#allocation2 + $0x48] sm:$0xf]
    %v144 = vld [vmem:[#allocation2 + $0x4c] sm:$0xf]
    %v145 = vld [vmem:[#allocation2 + $0x50] sm:$0xf]
    %v146 = vld [vmem:[#allocation2 + $0x54] sm:$0xf]
    %v147 = vld [vmem:[#allocation2 + $0x58] sm:$0xf]
    %v148 = vld [vmem:[#allocation2 + $0x5c] sm:$0xf]
    %v149 = vld [vmem:[#allocation2 + $0x60] sm:$0xf]
    %v150 = vld [vmem:[#allocation2 + $0x64] sm:$0xf]
    %v151 = vld [vmem:[#allocation2 + $0x68] sm:$0xf]
    %v152 = vld [vmem:[#allocation2 + $0x6c] sm:$0xf]
    %v153 = vld [vmem:[#allocation2 + $0x70] sm:$0xf]
    %v154 = vld [vmem:[#allocation2 + $0x74] sm:$0xf]
    %v155 = vld [vmem:[#allocation2 + $0x78] sm:$0xf]
    %v156 = vld [vmem:[#allocation2 + $0x7c] sm:$0xf]
    %v157 = vld [vmem:[%s2 + $0x1] sm:$0x1]
    %v158 = vlaneseq
    %v159 = vshrl.u32 %v158, 7
    %v160 = vsub.s32 0, %v159
    %v161 = vrot.slane %v157, %v160
    %v178 = vunpack.c.l.b16 %v141
    %v179 = vunpack.c.l.b16 %v142
    %v180 = vunpack.c.l.b16 %v143
    %v181 = vunpack.c.l.b16 %v144
    %v182 = vunpack.c.l.b16 %v145
    %v183 = vunpack.c.l.b16 %v146
    %v184 = vunpack.c.l.b16 %v147
    %v185 = vunpack.c.l.b16 %v148
    %v186 = vunpack.c.l.b16 %v149
    %v187 = vunpack.c.l.b16 %v150
    %v188 = vunpack.c.l.b16 %v151
    %v189 = vunpack.c.l.b16 %v152
    %v190 = vunpack.c.l.b16 %v153
    %v191 = vunpack.c.l.b16 %v154
    %v192 = vunpack.c.l.b16 %v155
    %v193 = vunpack.c.l.b16 %v156
    %v194 = vpack.c.b16 %v179, %v178
    %v195 = vpack.c.b16 %v181, %v180
    %v196 = vpack.c.b16 %v183, %v182
    %v197 = vpack.c.b16 %v185, %v184
    %v198 = vpack.c.b16 %v187, %v186
    %v199 = vpack.c.b16 %v189, %v188
    %v200 = vpack.c.b16 %v191, %v190
    %v201 = vpack.c.b16 %v193, %v192
    %210 = vmatprep.subr.bf16.mxu0 0
    %211 = vmatpush1.bf16.msra.mxu0 %v194
    %212 = vmatprep.subr.bf16.mxu0 0
    %213 = vmatpush1.bf16.msra.mxu0 %v195
    %214 = vmatprep.subr.bf16.mxu0 0
    %215 = vmatpush1.bf16.msra.mxu0 %v196
    %216 = vmatprep.subr.bf16.mxu0 0
    %217 = vmatpush1.bf16.msra.mxu0 %v197
    %218 = vmatprep.subr.bf16.mxu0 0
    %219 = vmatpush1.bf16.msra.mxu0 %v198
    %220 = vmatprep.subr.bf16.mxu0 0
    %221 = vmatpush1.bf16.msra.mxu0 %v199
    %222 = vmatprep.subr.bf16.mxu0 0
    %223 = vmatpush1.bf16.msra.mxu0 %v200
    %224 = vmatprep.subr.bf16.mxu0 0
    %225 = vmatpush1.bf16.msra.mxu0 %v201
    %226 = vmatprep.subr.bf16.mxu0 0
    %227 = vmatpush1.bf16.msra.mxu0 0
    %228 = vmatprep.subr.bf16.mxu0 0
    %229 = vmatpush1.bf16.msra.mxu0 0
    %230 = vmatprep.subr.bf16.mxu0 0
    %231 = vmatpush1.bf16.msra.mxu0 0
    %232 = vmatprep.subr.bf16.mxu0 0
    %233 = vmatpush1.bf16.msra.mxu0 0
    %234 = vmatprep.subr.bf16.mxu0 0
    %235 = vmatpush1.bf16.msra.mxu0 0
    %236 = vmatprep.subr.bf16.mxu0 0
    %237 = vmatpush1.bf16.msra.mxu0 0
    %238 = vmatprep.subr.bf16.mxu0 0
    %239 = vmatpush1.bf16.msra.mxu0 0
    %240 = vmatprep.subr.bf16.mxu0 0
    %241 = vmatpush1.bf16.msra.mxu0 0
    %242 = vmatprep.mubr.bf16.mxu0 0
    %243 = vmatmul.mubr.bf16.gmra.mrb[0].mxu0 %v140
    %v244 = vpop.f32.mrb[0].mxu0
    %v245 = vadd.f32 %v161, %v244
    %v246 = vpop.f32.mrb[0].mxu0
    %v247 = vpop.f32.mrb[0].mxu0
    %v248 = vpop.f32.mrb[0].mxu0
    %249 = vdwg.mxu0
    %250 = vst [vmem:[%s3] sm:$0xff] %v245
    // Predicated region
    $region18: #{mlp_policy.1} parent=1 // pred_check
      _
    $region19: #{mlp_policy.1} parent=1 // pred_check_branch
      %252 = sbr.rel (0) target = $region21
    $region20: #{mlp_policy.1} parent=1 // pred_region
      _
    $region21: #{mlp_policy.1} parent=1 // pred_fallthru
      _
    // Predicated region
    $region22: #{mlp_policy.1} parent=1 // pred_check
      _
    $region23: #{mlp_policy.1} parent=1 // pred_check_branch
      %254 = sbr.rel (0) target = $region25
    $region24: #{mlp_policy.1} parent=1 // pred_region
      _
    $region25: #{mlp_policy.1} parent=1 // pred_fallthru
      _
    %255 = vsyncpa [#allocation3], 1

</llo_original>
